<compile_context>
chip_gen: v7x
topology: tpu7x:2x2x1
jax: 0.10.0
libtpu: 0.0.40
codegen_flags: <defaults>
</compile_context>

<pallas_src>
import math
import functools

import jax
import jax.numpy as jnp
from jax.experimental import pallas as pl
from jax.experimental.pallas import tpu as pltpu


# ----------------------------------------------------------------------------
# Fused kernel: conv1 + bias + Swish + temb-add + conv2 + bias + residual + Swish
# (one grid step per batch element; temb MLP is precomputed in the wrapper)
# ----------------------------------------------------------------------------
def _bottleneck_kernel(te_ref, x_ref, m_ref,
                       w1_ref, b1_ref, w2_ref, b2_ref,
                       o_ref, *, H, W, C, C2):
    HW = H * W
    cdt = w1_ref.dtype            # MXU input dtype (f32 or bf16); accum is f32.

    x2d = x_ref[0]                # (C, HW) float32 — kept f32 for exact residual
    te = te_ref[0]                # (C2, 1) float32 — precomputed time embedding

    def conv3x3(act, w_ref, cin):
        """act: (cin, HW) f32 -> (cout, HW) f32 via one im2col MXU matmul.

        The 9 taps are zero-padded lane shifts of the flat activation; the
        precomputed masks zero every position whose source pixel is out of
        bounds (the 1-pixel conv padding).  No padded scratch, no halo stores.
        """
        taps = []
        for kh in range(3):
            for kw in range(3):
                t = kh * 3 + kw
                s = (kh - 1) * W + (kw - 1)        # lane shift of this tap
                if s > 0:
                    shifted = jnp.concatenate(
                        [act[:, s:], jnp.zeros((cin, s), jnp.float32)],
                        axis=-1)
                elif s < 0:
                    shifted = jnp.concatenate(
                        [jnp.zeros((cin, -s), jnp.float32), act[:, :HW + s]],
                        axis=-1)
                else:
                    shifted = act
                taps.append(shifted * m_ref[t:t + 1, :])   # boundary mask
        pat = jnp.concatenate(taps, axis=0)                 # (9*cin, HW)
        return jnp.dot(w_ref[...], pat.astype(cdt),
                       preferred_element_type=jnp.float32)  # (cout, HW)

    # ---- conv1 -> bias -> Swish -> + time embedding --------------------------
    h = conv3x3(x2d, w1_ref, C) + b1_ref[...]
    h = h * jax.nn.sigmoid(h)                                # Swish
    h = h + te                                               # (C2, 1) broadcast

    # ---- conv2 -> bias -> residual -> Swish ----------------------------------
    o = conv3x3(h, w2_ref, C2) + b2_ref[...] + x2d           # residual in f32
    o = o * jax.nn.sigmoid(o)                                # Swish
    o_ref[0] = o.astype(o_ref.dtype)                         # lane-dense store


# ----------------------------------------------------------------------------
# Wrapper helpers (plain JAX, run once per call — not inside the kernel)
# ----------------------------------------------------------------------------
def _sincos_features(t, n_channels):
    """Sinusoidal features from TimeEmbedding.forward (pre-MLP part)."""
    half_dim = n_channels // 8
    scale = math.log(10000.0) / (half_dim - 1)
    freqs = jnp.exp(jnp.arange(half_dim, dtype=jnp.float32) * -scale)
    args = t.astype(jnp.float32)[:, None] * freqs[None, :]
    return jnp.concatenate([jnp.sin(args), jnp.cos(args)], axis=1)  # (B, n_ch//4)


def _time_embedding(t, params, C2):
    """TimeEmbedding.forward: sin/cos -> lin1 -> Swish -> lin2.  (B, C2)."""
    emb = _sincos_features(t, C2)
    te = emb @ params["lin1_w"] + params["lin1_b"]
    te = te * jax.nn.sigmoid(te)
    te = te @ params["lin2_w"] + params["lin2_b"]
    return te


def _boundary_masks(H, W):
    """(9, H*W) f32: mask[t, r*W+w] = 1 iff source pixel of tap t is in bounds."""
    idx = jnp.arange(H * W, dtype=jnp.int32)
    r, w = idx // W, idx % W
    masks = []
    for kh in range(3):
        row_ok = (r + (kh - 1) >= 0) & (r + (kh - 1) <= H - 1)
        for kw in range(3):
            col_ok = (w + (kw - 1) >= 0) & (w + (kw - 1) <= W - 1)
            masks.append((row_ok & col_ok).astype(jnp.float32))
    return jnp.stack(masks)


# ----------------------------------------------------------------------------
# Public forward
# ----------------------------------------------------------------------------
def bottleneck_forward(x_nchw, t, params, *, compute_dtype=jnp.float32,
                       out_dtype=jnp.float32):
    B, C, H, W = x_nchw.shape
    # TimeEmbedding(2C) needs half_dim = C // 4 >= 2 (else divide-by-zero).
    assert C >= 8 and C % 4 == 0, "input_channels must be a multiple of 4, >= 8"
    C2 = 2 * C
    HW = H * W

    # Flattened NCHW is exactly the channel-major layout the kernel wants;
    # x stays f32 so the residual add inside the kernel is exact.
    x = x_nchw.reshape(B, C, HW).astype(jnp.float32)

    # Time-embedding MLP hoisted out of the kernel (review item 8).
    te = _time_embedding(t, params, C2).reshape(B, C2, 1).astype(jnp.float32)
    masks = _boundary_masks(H, W)

    # Conv weights in transposed im2col form: (Cout, 9*Cin).
    w1 = params["conv1_w"].reshape(9 * C, C2).T.astype(compute_dtype)
    w2 = params["conv2_w"].reshape(9 * C2, C).T.astype(compute_dtype)
    b1 = params["conv1_b"].reshape(C2, 1).astype(jnp.float32)
    b2 = params["conv2_b"].reshape(C, 1).astype(jnp.float32)

    kernel = functools.partial(_bottleneck_kernel, H=H, W=W, C=C, C2=C2)

    out = pl.pallas_call(
        kernel,
        out_shape=jax.ShapeDtypeStruct((B, C, HW), out_dtype),
        grid=(B,),
        in_specs=[
            pl.BlockSpec((1, C2, 1), lambda b: (b, 0, 0)),     # time embedding
            pl.BlockSpec((1, C, HW), lambda b: (b, 0, 0)),     # x (flat NCHW, f32)
            pl.BlockSpec((9, HW), lambda b: (0, 0)),           # boundary masks
            pl.BlockSpec((C2, 9 * C), lambda b: (0, 0)),       # conv1 weight
            pl.BlockSpec((C2, 1), lambda b: (0, 0)),           # conv1 bias
            pl.BlockSpec((C, 9 * C2), lambda b: (0, 0)),       # conv2 weight
            pl.BlockSpec((C, 1), lambda b: (0, 0)),            # conv2 bias
        ],
        out_specs=pl.BlockSpec((1, C, HW), lambda b: (b, 0, 0)),
        compiler_params=pltpu.CompilerParams(
            dimension_semantics=("parallel",),        # batch axis: megacore-safe
            vmem_limit_bytes=48 * 1024 * 1024,        # fits v7x 64 MiB; raise on v5e/v6e
        ),
    )(te, x, masks, w1, b1, w2, b2)

    return out.reshape(B, C, H, W)                    # NCHW (PyTorch convention)


# ----------------------------------------------------------------------------
# Pure-JAX reference (correctness sanity check)
# ----------------------------------------------------------------------------
def bottleneck_reference(x_nchw, t, params):
    B, C, H, W = x_nchw.shape
    C2 = 2 * C
    x = jnp.transpose(x_nchw, (0, 2, 3, 1)).astype(jnp.float32)   # NHWC

    def conv(a, w, b):
        y = jax.lax.conv_general_dilated(
            a, w, window_strides=(1, 1), padding=((1, 1), (1, 1)),
            dimension_numbers=("NHWC", "HWIO", "NHWC"))
        return y + b.reshape(1, 1, 1, -1)

    te = _time_embedding(t, params, C2)                           # (B, C2)
    h = conv(x, params["conv1_w"], params["conv1_b"])
    h = h * jax.nn.sigmoid(h)
    h = h + te[:, None, None, :]
    o = conv(h, params["conv2_w"], params["conv2_b"]) + x
    o = o * jax.nn.sigmoid(o)
    return jnp.transpose(o, (0, 3, 1, 2))


# ----------------------------------------------------------------------------
# Main
# ----------------------------------------------------------------------------
if __name__ == "__main__":
    B, C, H, W = 2, 8, 16, 16
    C2 = 2 * C

    key = jax.random.PRNGKey(0)
    ks = jax.random.split(key, 10)

    params = {
        "conv1_w": 0.1 * jax.random.normal(ks[0], (3, 3, C, C2), jnp.float32),  # HWIO
        "conv1_b": 0.1 * jax.random.normal(ks[1], (1, C2), jnp.float32),
        "conv2_w": 0.1 * jax.random.normal(ks[2], (3, 3, C2, C), jnp.float32),  # HWIO
        "conv2_b": 0.1 * jax.random.normal(ks[3], (1, C), jnp.float32),
        "lin1_w": 0.2 * jax.random.normal(ks[4], (C2 // 4, C2), jnp.float32),   # (in, out)
        "lin1_b": 0.1 * jax.random.normal(ks[5], (1, C2), jnp.float32),
        "lin2_w": 0.2 * jax.random.normal(ks[6], (C2, C2), jnp.float32),
        "lin2_b": 0.1 * jax.random.normal(ks[7], (1, C2), jnp.float32),
    }

    x = jax.random.normal(ks[8], (B, C, H, W), jnp.float32)   # NCHW, like PyTorch
    t = jax.random.uniform(ks[9], (B,), jnp.float32) * 100.0  # timesteps

    ref = jax.block_until_ready(bottleneck_reference(x, t, params))

    # f32 path: strict check against the reference.
    out = jax.block_until_ready(bottleneck_forward(x, t, params))
    assert out.shape == (B, C, H, W), out.shape
    assert jnp.allclose(out, ref, atol=1e-3, rtol=1e-3), \
        f"f32 max abs err {float(jnp.max(jnp.abs(out - ref)))}"

    # bf16 MXU-input path (residual stays f32 now); bf16 output (review item 11).
    out_bf16 = jax.block_until_ready(
        bottleneck_forward(x, t, params,
                           compute_dtype=jnp.bfloat16, out_dtype=jnp.bfloat16))
    assert out_bf16.shape == (B, C, H, W), out_bf16.shape
    assert jnp.allclose(out_bf16.astype(jnp.float32), ref, atol=1e-1, rtol=1e-1), \
        f"bf16 max abs err {float(jnp.max(jnp.abs(out_bf16.astype(jnp.float32) - ref)))}"

    print("KERNEL_OK")
</pallas_src>

<mosaic_0001>
module attributes {stable_mosaic.version = 11 : i64} {
  func.func @_bottleneck_kernel(%arg0: i32, %arg1: memref<1x16x1xf32, #tpu.memory_space<vmem>>, %arg2: memref<1x8x256xf32, #tpu.memory_space<vmem>>, %arg3: memref<9x256xf32, #tpu.memory_space<vmem>>, %arg4: memref<16x72xf32, #tpu.memory_space<vmem>>, %arg5: memref<16x1xf32, #tpu.memory_space<vmem>>, %arg6: memref<8x144xf32, #tpu.memory_space<vmem>>, %arg7: memref<8x1xf32, #tpu.memory_space<vmem>>, %arg8: memref<1x8x256xf32, #tpu.memory_space<vmem>>) attributes {dimension_semantics = [#tpu.dimension_semantics<parallel>], iteration_bounds = array<i64: 2>, scalar_prefetch = 0 : i64, scratch_operands = 0 : i64, tpu.core_type = #tpu.core_type<tc>, window_params = [{transform_indices = @transform_0, window_bounds = array<i64: 1, 16, 1>}, {transform_indices = @transform_1, window_bounds = array<i64: 1, 8, 256>}, {pipeline_mode = #tpu.pipeline_mode<synchronous>, transform_indices = @transform_2, window_bounds = array<i64: 9, 256>}, {pipeline_mode = #tpu.pipeline_mode<synchronous>, transform_indices = @transform_3, window_bounds = array<i64: 16, 72>}, {pipeline_mode = #tpu.pipeline_mode<synchronous>, transform_indices = @transform_4, window_bounds = array<i64: 16, 1>}, {pipeline_mode = #tpu.pipeline_mode<synchronous>, transform_indices = @transform_5, window_bounds = array<i64: 8, 144>}, {pipeline_mode = #tpu.pipeline_mode<synchronous>, transform_indices = @transform_6, window_bounds = array<i64: 8, 1>}, {transform_indices = @transform_7, window_bounds = array<i64: 1, 8, 256>}]} {
    %c0 = arith.constant 0 : index
    %c0_0 = arith.constant 0 : index
    %c0_1 = arith.constant 0 : index
    %0 = vector.load %arg2[%c0, %c0_0, %c0_1] : memref<1x8x256xf32, #tpu.memory_space<vmem>>, vector<1x8x256xf32>
    %1 = vector.shape_cast %0 : vector<1x8x256xf32> to vector<8x256xf32>
    %c0_2 = arith.constant 0 : index
    %c0_3 = arith.constant 0 : index
    %c0_4 = arith.constant 0 : index
    %2 = vector.load %arg1[%c0_2, %c0_3, %c0_4] : memref<1x16x1xf32, #tpu.memory_space<vmem>>, vector<1x16x1xf32>
    %3 = vector.shape_cast %2 : vector<1x16x1xf32> to vector<16x1xf32>
    %cst = arith.constant 0.000000e+00 : f32
    %4 = vector.broadcast %cst : f32 to vector<8x17xf32>
    %5 = vector.extract_strided_slice %1 {offsets = [0, 0], sizes = [8, 239], strides = [1, 1]} : vector<8x256xf32> to vector<8x239xf32>
    %6 = tpu.concatenate %4, %5 in 1 : vector<8x17xf32>, vector<8x239xf32> -> vector<8x256xf32>
    %c0_5 = arith.constant 0 : index
    %c0_6 = arith.constant 0 : index
    %7 = vector.load %arg3[%c0_5, %c0_6] : memref<9x256xf32, #tpu.memory_space<vmem>>, vector<1x256xf32>
    %8 = vector.broadcast %7 : vector<1x256xf32> to vector<8x256xf32>
    %9 = arith.mulf %6, %8 : vector<8x256xf32>
    %cst_7 = arith.constant 0.000000e+00 : f32
    %10 = vector.broadcast %cst_7 : f32 to vector<8x16xf32>
    %11 = vector.extract_strided_slice %1 {offsets = [0, 0], sizes = [8, 240], strides = [1, 1]} : vector<8x256xf32> to vector<8x240xf32>
    %12 = tpu.concatenate %10, %11 in 1 : vector<8x16xf32>, vector<8x240xf32> -> vector<8x256xf32>
    %c1 = arith.constant 1 : index
    %c0_8 = arith.constant 0 : index
    %13 = vector.load %arg3[%c1, %c0_8] : memref<9x256xf32, #tpu.memory_space<vmem>>, vector<1x256xf32>
    %14 = vector.broadcast %13 : vector<1x256xf32> to vector<8x256xf32>
    %15 = arith.mulf %12, %14 : vector<8x256xf32>
    %cst_9 = arith.constant 0.000000e+00 : f32
    %16 = vector.broadcast %cst_9 : f32 to vector<8x15xf32>
    %17 = vector.extract_strided_slice %1 {offsets = [0, 0], sizes = [8, 241], strides = [1, 1]} : vector<8x256xf32> to vector<8x241xf32>
    %18 = tpu.concatenate %16, %17 in 1 : vector<8x15xf32>, vector<8x241xf32> -> vector<8x256xf32>
    %c2 = arith.constant 2 : index
    %c0_10 = arith.constant 0 : index
    %19 = vector.load %arg3[%c2, %c0_10] : memref<9x256xf32, #tpu.memory_space<vmem>>, vector<1x256xf32>
    %20 = vector.broadcast %19 : vector<1x256xf32> to vector<8x256xf32>
    %21 = arith.mulf %18, %20 : vector<8x256xf32>
    %cst_11 = arith.constant 0.000000e+00 : f32
    %22 = vector.broadcast %cst_11 : f32 to vector<8x1xf32>
    %23 = vector.extract_strided_slice %1 {offsets = [0, 0], sizes = [8, 255], strides = [1, 1]} : vector<8x256xf32> to vector<8x255xf32>
    %24 = tpu.concatenate %22, %23 in 1 : vector<8x1xf32>, vector<8x255xf32> -> vector<8x256xf32>
    %c3 = arith.constant 3 : index
    %c0_12 = arith.constant 0 : index
    %25 = vector.load %arg3[%c3, %c0_12] : memref<9x256xf32, #tpu.memory_space<vmem>>, vector<1x256xf32>
    %26 = vector.broadcast %25 : vector<1x256xf32> to vector<8x256xf32>
    %27 = arith.mulf %24, %26 : vector<8x256xf32>
    %c4 = arith.constant 4 : index
    %c0_13 = arith.constant 0 : index
    %28 = vector.load %arg3[%c4, %c0_13] : memref<9x256xf32, #tpu.memory_space<vmem>>, vector<1x256xf32>
    %29 = vector.broadcast %28 : vector<1x256xf32> to vector<8x256xf32>
    %30 = arith.mulf %1, %29 : vector<8x256xf32>
    %31 = vector.extract_strided_slice %1 {offsets = [0, 1], sizes = [8, 255], strides = [1, 1]} : vector<8x256xf32> to vector<8x255xf32>
    %cst_14 = arith.constant 0.000000e+00 : f32
    %32 = vector.broadcast %cst_14 : f32 to vector<8x1xf32>
    %33 = tpu.concatenate %31, %32 in 1 : vector<8x255xf32>, vector<8x1xf32> -> vector<8x256xf32>
    %c5 = arith.constant 5 : index
    %c0_15 = arith.constant 0 : index
    %34 = vector.load %arg3[%c5, %c0_15] : memref<9x256xf32, #tpu.memory_space<vmem>>, vector<1x256xf32>
    %35 = vector.broadcast %34 : vector<1x256xf32> to vector<8x256xf32>
    %36 = arith.mulf %33, %35 : vector<8x256xf32>
    %37 = vector.extract_strided_slice %1 {offsets = [0, 15], sizes = [8, 241], strides = [1, 1]} : vector<8x256xf32> to vector<8x241xf32>
    %cst_16 = arith.constant 0.000000e+00 : f32
    %38 = vector.broadcast %cst_16 : f32 to vector<8x15xf32>
    %39 = tpu.concatenate %37, %38 in 1 : vector<8x241xf32>, vector<8x15xf32> -> vector<8x256xf32>
    %c6 = arith.constant 6 : index
    %c0_17 = arith.constant 0 : index
    %40 = vector.load %arg3[%c6, %c0_17] : memref<9x256xf32, #tpu.memory_space<vmem>>, vector<1x256xf32>
    %41 = vector.broadcast %40 : vector<1x256xf32> to vector<8x256xf32>
    %42 = arith.mulf %39, %41 : vector<8x256xf32>
    %43 = vector.extract_strided_slice %1 {offsets = [0, 16], sizes = [8, 240], strides = [1, 1]} : vector<8x256xf32> to vector<8x240xf32>
    %cst_18 = arith.constant 0.000000e+00 : f32
    %44 = vector.broadcast %cst_18 : f32 to vector<8x16xf32>
    %45 = tpu.concatenate %43, %44 in 1 : vector<8x240xf32>, vector<8x16xf32> -> vector<8x256xf32>
    %c7 = arith.constant 7 : index
    %c0_19 = arith.constant 0 : index
    %46 = vector.load %arg3[%c7, %c0_19] : memref<9x256xf32, #tpu.memory_space<vmem>>, vector<1x256xf32>
    %47 = vector.broadcast %46 : vector<1x256xf32> to vector<8x256xf32>
    %48 = arith.mulf %45, %47 : vector<8x256xf32>
    %49 = vector.extract_strided_slice %1 {offsets = [0, 17], sizes = [8, 239], strides = [1, 1]} : vector<8x256xf32> to vector<8x239xf32>
    %cst_20 = arith.constant 0.000000e+00 : f32
    %50 = vector.broadcast %cst_20 : f32 to vector<8x17xf32>
    %51 = tpu.concatenate %49, %50 in 1 : vector<8x239xf32>, vector<8x17xf32> -> vector<8x256xf32>
    %c8 = arith.constant 8 : index
    %c0_21 = arith.constant 0 : index
    %52 = vector.load %arg3[%c8, %c0_21] : memref<9x256xf32, #tpu.memory_space<vmem>>, vector<1x256xf32>
    %53 = vector.broadcast %52 : vector<1x256xf32> to vector<8x256xf32>
    %54 = arith.mulf %51, %53 : vector<8x256xf32>
    %55 = tpu.concatenate %9, %15, %21, %27, %30, %36, %42, %48, %54 in 0 : vector<8x256xf32>, vector<8x256xf32>, vector<8x256xf32>, vector<8x256xf32>, vector<8x256xf32>, vector<8x256xf32>, vector<8x256xf32>, vector<8x256xf32>, vector<8x256xf32> -> vector<72x256xf32>
    %c0_22 = arith.constant 0 : index
    %c0_23 = arith.constant 0 : index
    %56 = vector.load %arg4[%c0_22, %c0_23] : memref<16x72xf32, #tpu.memory_space<vmem>>, vector<16x72xf32>
    %cst_24 = arith.constant dense<0.000000e+00> : vector<16x256xf32>
    %57 = tpu.matmul %56, %55, %cst_24 {dimension_numbers = #tpu.dot_dimension_numbers<[1], [0], [0], [1], [0, 0, 1, 1], [], []>} : vector<16x72xf32>, vector<72x256xf32>, vector<16x256xf32> -> vector<16x256xf32>
    %c0_25 = arith.constant 0 : index
    %c0_26 = arith.constant 0 : index
    %58 = vector.load %arg5[%c0_25, %c0_26] : memref<16x1xf32, #tpu.memory_space<vmem>>, vector<16x1xf32>
    %59 = vector.broadcast %58 : vector<16x1xf32> to vector<16x256xf32>
    %60 = arith.addf %57, %59 : vector<16x256xf32>
    %61 = arith.negf %60 : vector<16x256xf32>
    %62 = math.exp %61 : vector<16x256xf32>
    %cst_27 = arith.constant 1.000000e+00 : f32
    %63 = vector.broadcast %cst_27 : f32 to vector<16x256xf32>
    %64 = arith.addf %63, %62 : vector<16x256xf32>
    %65 = arith.divf %63, %64 : vector<16x256xf32>
    %66 = arith.mulf %60, %65 : vector<16x256xf32>
    %67 = vector.broadcast %3 : vector<16x1xf32> to vector<16x256xf32>
    %68 = arith.addf %66, %67 : vector<16x256xf32>
    %cst_28 = arith.constant 0.000000e+00 : f32
    %69 = vector.broadcast %cst_28 : f32 to vector<16x17xf32>
    %70 = vector.extract_strided_slice %68 {offsets = [0, 0], sizes = [16, 239], strides = [1, 1]} : vector<16x256xf32> to vector<16x239xf32>
    %71 = tpu.concatenate %69, %70 in 1 : vector<16x17xf32>, vector<16x239xf32> -> vector<16x256xf32>
    %c0_29 = arith.constant 0 : index
    %c0_30 = arith.constant 0 : index
    %72 = vector.load %arg3[%c0_29, %c0_30] : memref<9x256xf32, #tpu.memory_space<vmem>>, vector<1x256xf32>
    %73 = vector.broadcast %72 : vector<1x256xf32> to vector<16x256xf32>
    %74 = arith.mulf %71, %73 : vector<16x256xf32>
    %cst_31 = arith.constant 0.000000e+00 : f32
    %75 = vector.broadcast %cst_31 : f32 to vector<16x16xf32>
    %76 = vector.extract_strided_slice %68 {offsets = [0, 0], sizes = [16, 240], strides = [1, 1]} : vector<16x256xf32> to vector<16x240xf32>
    %77 = tpu.concatenate %75, %76 in 1 : vector<16x16xf32>, vector<16x240xf32> -> vector<16x256xf32>
    %c1_32 = arith.constant 1 : index
    %c0_33 = arith.constant 0 : index
    %78 = vector.load %arg3[%c1_32, %c0_33] : memref<9x256xf32, #tpu.memory_space<vmem>>, vector<1x256xf32>
    %79 = vector.broadcast %78 : vector<1x256xf32> to vector<16x256xf32>
    %80 = arith.mulf %77, %79 : vector<16x256xf32>
    %cst_34 = arith.constant 0.000000e+00 : f32
    %81 = vector.broadcast %cst_34 : f32 to vector<16x15xf32>
    %82 = vector.extract_strided_slice %68 {offsets = [0, 0], sizes = [16, 241], strides = [1, 1]} : vector<16x256xf32> to vector<16x241xf32>
    %83 = tpu.concatenate %81, %82 in 1 : vector<16x15xf32>, vector<16x241xf32> -> vector<16x256xf32>
    %c2_35 = arith.constant 2 : index
    %c0_36 = arith.constant 0 : index
    %84 = vector.load %arg3[%c2_35, %c0_36] : memref<9x256xf32, #tpu.memory_space<vmem>>, vector<1x256xf32>
    %85 = vector.broadcast %84 : vector<1x256xf32> to vector<16x256xf32>
    %86 = arith.mulf %83, %85 : vector<16x256xf32>
    %cst_37 = arith.constant 0.000000e+00 : f32
    %87 = vector.broadcast %cst_37 : f32 to vector<16x1xf32>
    %88 = vector.extract_strided_slice %68 {offsets = [0, 0], sizes = [16, 255], strides = [1, 1]} : vector<16x256xf32> to vector<16x255xf32>
    %89 = tpu.concatenate %87, %88 in 1 : vector<16x1xf32>, vector<16x255xf32> -> vector<16x256xf32>
    %c3_38 = arith.constant 3 : index
    %c0_39 = arith.constant 0 : index
    %90 = vector.load %arg3[%c3_38, %c0_39] : memref<9x256xf32, #tpu.memory_space<vmem>>, vector<1x256xf32>
    %91 = vector.broadcast %90 : vector<1x256xf32> to vector<16x256xf32>
    %92 = arith.mulf %89, %91 : vector<16x256xf32>
    %c4_40 = arith.constant 4 : index
    %c0_41 = arith.constant 0 : index
    %93 = vector.load %arg3[%c4_40, %c0_41] : memref<9x256xf32, #tpu.memory_space<vmem>>, vector<1x256xf32>
    %94 = vector.broadcast %93 : vector<1x256xf32> to vector<16x256xf32>
    %95 = arith.mulf %68, %94 : vector<16x256xf32>
    %96 = vector.extract_strided_slice %68 {offsets = [0, 1], sizes = [16, 255], strides = [1, 1]} : vector<16x256xf32> to vector<16x255xf32>
    %cst_42 = arith.constant 0.000000e+00 : f32
    %97 = vector.broadcast %cst_42 : f32 to vector<16x1xf32>
    %98 = tpu.concatenate %96, %97 in 1 : vector<16x255xf32>, vector<16x1xf32> -> vector<16x256xf32>
    %c5_43 = arith.constant 5 : index
    %c0_44 = arith.constant 0 : index
    %99 = vector.load %arg3[%c5_43, %c0_44] : memref<9x256xf32, #tpu.memory_space<vmem>>, vector<1x256xf32>
    %100 = vector.broadcast %99 : vector<1x256xf32> to vector<16x256xf32>
    %101 = arith.mulf %98, %100 : vector<16x256xf32>
    %102 = vector.extract_strided_slice %68 {offsets = [0, 15], sizes = [16, 241], strides = [1, 1]} : vector<16x256xf32> to vector<16x241xf32>
    %cst_45 = arith.constant 0.000000e+00 : f32
    %103 = vector.broadcast %cst_45 : f32 to vector<16x15xf32>
    %104 = tpu.concatenate %102, %103 in 1 : vector<16x241xf32>, vector<16x15xf32> -> vector<16x256xf32>
    %c6_46 = arith.constant 6 : index
    %c0_47 = arith.constant 0 : index
    %105 = vector.load %arg3[%c6_46, %c0_47] : memref<9x256xf32, #tpu.memory_space<vmem>>, vector<1x256xf32>
    %106 = vector.broadcast %105 : vector<1x256xf32> to vector<16x256xf32>
    %107 = arith.mulf %104, %106 : vector<16x256xf32>
    %108 = vector.extract_strided_slice %68 {offsets = [0, 16], sizes = [16, 240], strides = [1, 1]} : vector<16x256xf32> to vector<16x240xf32>
    %cst_48 = arith.constant 0.000000e+00 : f32
    %109 = vector.broadcast %cst_48 : f32 to vector<16x16xf32>
    %110 = tpu.concatenate %108, %109 in 1 : vector<16x240xf32>, vector<16x16xf32> -> vector<16x256xf32>
    %c7_49 = arith.constant 7 : index
    %c0_50 = arith.constant 0 : index
    %111 = vector.load %arg3[%c7_49, %c0_50] : memref<9x256xf32, #tpu.memory_space<vmem>>, vector<1x256xf32>
    %112 = vector.broadcast %111 : vector<1x256xf32> to vector<16x256xf32>
    %113 = arith.mulf %110, %112 : vector<16x256xf32>
    %114 = vector.extract_strided_slice %68 {offsets = [0, 17], sizes = [16, 239], strides = [1, 1]} : vector<16x256xf32> to vector<16x239xf32>
    %cst_51 = arith.constant 0.000000e+00 : f32
    %115 = vector.broadcast %cst_51 : f32 to vector<16x17xf32>
    %116 = tpu.concatenate %114, %115 in 1 : vector<16x239xf32>, vector<16x17xf32> -> vector<16x256xf32>
    %c8_52 = arith.constant 8 : index
    %c0_53 = arith.constant 0 : index
    %117 = vector.load %arg3[%c8_52, %c0_53] : memref<9x256xf32, #tpu.memory_space<vmem>>, vector<1x256xf32>
    %118 = vector.broadcast %117 : vector<1x256xf32> to vector<16x256xf32>
    %119 = arith.mulf %116, %118 : vector<16x256xf32>
    %120 = tpu.concatenate %74, %80, %86, %92, %95, %101, %107, %113, %119 in 0 : vector<16x256xf32>, vector<16x256xf32>, vector<16x256xf32>, vector<16x256xf32>, vector<16x256xf32>, vector<16x256xf32>, vector<16x256xf32>, vector<16x256xf32>, vector<16x256xf32> -> vector<144x256xf32>
    %c0_54 = arith.constant 0 : index
    %c0_55 = arith.constant 0 : index
    %121 = vector.load %arg6[%c0_54, %c0_55] : memref<8x144xf32, #tpu.memory_space<vmem>>, vector<8x144xf32>
    %cst_56 = arith.constant dense<0.000000e+00> : vector<8x256xf32>
    %122 = tpu.matmul %121, %120, %cst_56 {dimension_numbers = #tpu.dot_dimension_numbers<[1], [0], [0], [1], [0, 0, 1, 1], [], []>} : vector<8x144xf32>, vector<144x256xf32>, vector<8x256xf32> -> vector<8x256xf32>
    %c0_57 = arith.constant 0 : index
    %c0_58 = arith.constant 0 : index
    %123 = vector.load %arg7[%c0_57, %c0_58] : memref<8x1xf32, #tpu.memory_space<vmem>>, vector<8x1xf32>
    %124 = vector.broadcast %123 : vector<8x1xf32> to vector<8x256xf32>
    %125 = arith.addf %122, %124 : vector<8x256xf32>
    %126 = arith.addf %125, %1 : vector<8x256xf32>
    %127 = arith.negf %126 : vector<8x256xf32>
    %128 = math.exp %127 : vector<8x256xf32>
    %cst_59 = arith.constant 1.000000e+00 : f32
    %129 = vector.broadcast %cst_59 : f32 to vector<8x256xf32>
    %130 = arith.addf %129, %128 : vector<8x256xf32>
    %131 = arith.divf %129, %130 : vector<8x256xf32>
    %132 = arith.mulf %126, %131 : vector<8x256xf32>
    %c0_60 = arith.constant 0 : index
    %c0_61 = arith.constant 0 : index
    %c0_62 = arith.constant 0 : index
    %133 = vector.load %arg8[%c0_60, %c0_61, %c0_62] : memref<1x8x256xf32, #tpu.memory_space<vmem>>, vector<1x8x256xf32>
    %134 = vector.shape_cast %133 : vector<1x8x256xf32> to vector<8x256xf32>
    %135 = vector.shape_cast %132 : vector<8x256xf32> to vector<1x8x256xf32>
    tpu.vector_store %arg8[%c0_60, %c0_61, %c0_62], %135 {strides = array<i32>} : memref<1x8x256xf32, #tpu.memory_space<vmem>>, vector<1x8x256xf32>,
    return
  }
  func.func @transform_0(%arg0: i32) -> (i32, i32, i32) {
    %c0_i32 = arith.constant 0 : i32
    %c0_i32_0 = arith.constant 0 : i32
    %c0_i32_1 = arith.constant 0 : i32
    return %arg0, %c0_i32, %c0_i32_0 : i32, i32, i32
  }
  func.func @transform_1(%arg0: i32) -> (i32, i32, i32) {
    %c0_i32 = arith.constant 0 : i32
    %c0_i32_0 = arith.constant 0 : i32
    %c0_i32_1 = arith.constant 0 : i32
    return %arg0, %c0_i32, %c0_i32_0 : i32, i32, i32
  }
  func.func @transform_2(%arg0: i32) -> (i32, i32) {
    %c0_i32 = arith.constant 0 : i32
    %c0_i32_0 = arith.constant 0 : i32
    %c0_i32_1 = arith.constant 0 : i32
    return %c0_i32, %c0_i32_0 : i32, i32
  }
  func.func @transform_3(%arg0: i32) -> (i32, i32) {
    %c0_i32 = arith.constant 0 : i32
    %c0_i32_0 = arith.constant 0 : i32
    %c0_i32_1 = arith.constant 0 : i32
    return %c0_i32, %c0_i32_0 : i32, i32
  }
  func.func @transform_4(%arg0: i32) -> (i32, i32) {
    %c0_i32 = arith.constant 0 : i32
    %c0_i32_0 = arith.constant 0 : i32
    %c0_i32_1 = arith.constant 0 : i32
    return %c0_i32, %c0_i32_0 : i32, i32
  }
  func.func @transform_5(%arg0: i32) -> (i32, i32) {
    %c0_i32 = arith.constant 0 : i32
    %c0_i32_0 = arith.constant 0 : i32
    %c0_i32_1 = arith.constant 0 : i32
    return %c0_i32, %c0_i32_0 : i32, i32
  }
  func.func @transform_6(%arg0: i32) -> (i32, i32) {
    %c0_i32 = arith.constant 0 : i32
    %c0_i32_0 = arith.constant 0 : i32
    %c0_i32_1 = arith.constant 0 : i32
    return %c0_i32, %c0_i32_0 : i32, i32
  }
  func.func @transform_7(%arg0: i32) -> (i32, i32, i32) {
    %c0_i32 = arith.constant 0 : i32
    %c0_i32_0 = arith.constant 0 : i32
    %c0_i32_1 = arith.constant 0 : i32
    return %arg0, %c0_i32, %c0_i32_0 : i32, i32, i32
  }
}

</mosaic_0001>

<llo_original>
// kernel: tpu_custom_call.1
$region0: #{tpu_custom_call.1}
  #allocation0 [shape = 'u32[]', space=smem, size = 0x4, offset = 0x4, fixed_abs, tag = 'smem constant byte address 0x4 - core index']
  #allocation1 [shape = 'u32[144,128]{1,0:T(1,128)}', space=vmem, size = 0x12000, scoped, tag = 'internal scratch']
  %s0 = inlined_call_operand.vmem [shape: f32[2,16,1], index: 0, kind: input, shape index: {}]
  %s1 = inlined_call_operand.vmem [shape: f32[2,8,256], index: 1, kind: input, shape index: {}]
  %s2 = inlined_call_operand.vmem [shape: f32[9,256], index: 2, kind: input, shape index: {}]
  %s3 = inlined_call_operand.hbm [shape: f32[16,72], index: 3, kind: input, shape index: {}]
  %s4 = inlined_call_operand.vmem [shape: f32[16,1], index: 4, kind: input, shape index: {}]
  %s5 = inlined_call_operand.hbm [shape: f32[8,144], index: 5, kind: input, shape index: {}]
  %s6 = inlined_call_operand.vmem [shape: f32[8,1], index: 6, kind: input, shape index: {}]
  %s7 = inlined_call_operand.hbm [shape: f32[2,8,256], index: 7, kind: output, shape index: {}]
  %s8 = sld [smem:[#allocation0]]
  $region69: #{tpu_custom_call.1} parent=0
    _
  %s10 = ssub.s32 1, %s8
  %s11 = scalar_select 0, %s10, %s8
  $region1: #{tpu_custom_call.1} parent=0
    #allocation2 [shape = 'u8[8192]{0}', space=vmem, size = 0x2000, scoped, tag = 'input window, operand 3, single buffered']
    #allocation3 [shape = 's32[2]{0}', space=sflag, size = 0x8, scoped, tag = 'scoped memory for tpu_custom_call.1']
    #allocation4 [shape = 's32[2]{0}', space=sflag, size = 0x8, scoped, tag = 'scoped memory for tpu_custom_call.1']
    #allocation5 [shape = 'u8[8192]{0}', space=vmem, size = 0x2000, scoped, tag = 'input window, operand 5, single buffered']
    #allocation6 [shape = 's32[1]{0}', space=sflag, size = 0x4, scoped, tag = 'scoped memory for tpu_custom_call.1']
    #allocation7 [shape = 'u8[16384]{0}', space=vmem, size = 0x4000, scoped, tag = 'output window, operand 0']
    %12 = vsyncpa [#allocation3], 0
    %13 = vsyncpa [#allocation6], 0
    %14 = vsyncpa [#allocation4], 0
    %s15 = scalar_lea.sflag [#allocation4], 1
    %16 = vsyncpa %s15, 0
    loop: start=0, step=1, limit=4
    $region2: #{tpu_custom_call.1} parent=1 // loop_pre_header
      _
    $region3: #{tpu_custom_call.1} parent=1 // loop_header
      %s18 = sphi 0, %s22
      %p19 = scmp.ge.s32.totalorder %s18, 4
      %s28 = sphi 0, %s30
      %s31 = sphi 0, %s28
      %s32 = sphi 0, %s31
      %s48 = sphi 0, %s32
      %s54 = sphi 0, %s56
      %s57 = sphi 0, %s54
      %s58 = sphi 0, %s57
      %s74 = sphi 0, %s58
      %s78 = sphi 0, %s78
      %s80 = sphi 0, %s78
      %s81 = sphi 0, %s80
      %s95 = sphi 0, %s81
      %s99 = sphi 0, %s99
      %s101 = sphi 0, %s99
      %s102 = sphi 0, %s101
      %s116 = sphi 0, %s102
      %s120 = sphi 0, %s120
      %s122 = sphi 0, %s120
      %s123 = sphi 0, %s122
      %s137 = sphi 0, %s123
      %s141 = sphi 0, %s141
      %s143 = sphi 0, %s141
      %s144 = sphi 0, %s143
      %s158 = sphi 0, %s144
      %s162 = sphi 0, %s162
      %s164 = sphi 0, %s162
      %s165 = sphi 0, %s164
      %s179 = sphi 0, %s165
      %s185 = sphi 0, %s187
      %s188 = sphi 0, %s185
      %s189 = sphi 0, %s188
      %s205 = sphi 0, %s189
    $region4: #{tpu_custom_call.1} parent=1 // loop_header_branch
      %21 = sbr.rel (%p19) target = $region8
    $region5: #{tpu_custom_call.1} parent=1 // loop_body
      %s23 = ssub.s32 %s18, 1
      %s24 = ssub.s32 %s18, 2
      %s25 = sadd.s32 %s18, 1
      %s26 = ssub.s32 %s18, %s25
      %p27 = scmp.eq.s32.totalorder %s26, 0
      %s29 = sadd.s32 %s28, 1
      %s30 = scalar_select %p27, %s28, %s29
      %p33 = pneg %p27
      %p34 = scmp.eq.s32.totalorder %s18, 1
      %p35 = por %p33, %p34
      %p36 = scmp.ne.s32.totalorder %s28, %s31
      %p37 = scmp.eq.s32.totalorder %s18, 0
      %p38 = por %p36, %p37
      %p39 = scmp.ne.s32.totalorder %s28, %s31
      %p40 = scmp.eq.s32.totalorder %s23, 1
      %p41 = por %p39, %p40
      %p42 = scmp.ne.s32.totalorder %s31, %s32
      %p43 = scmp.eq.s32.totalorder %s23, 0
      %p44 = por %p42, %p43
      %p45 = scmp.ne.s32.totalorder %s31, %s32
      %p46 = scmp.eq.s32.totalorder %s24, 1
      %p47 = por %p45, %p46
      %p49 = scmp.ne.s32.totalorder %s32, %s48
      %p50 = scmp.eq.s32.totalorder %s24, 0
      %p51 = por %p49, %p50
      %s52 = ssub.s32 %s18, %s25
      %p53 = scmp.eq.s32.totalorder %s52, 0
      %s55 = sadd.s32 %s54, 1
      %s56 = scalar_select %p53, %s54, %s55
      %p59 = pneg %p53
      %p60 = scmp.eq.s32.totalorder %s18, 1
      %p61 = por %p59, %p60
      %p62 = scmp.ne.s32.totalorder %s54, %s57
      %p63 = scmp.eq.s32.totalorder %s18, 0
      %p64 = por %p62, %p63
      %p65 = scmp.ne.s32.totalorder %s54, %s57
      %p66 = scmp.eq.s32.totalorder %s23, 1
      %p67 = por %p65, %p66
      %p68 = scmp.ne.s32.totalorder %s57, %s58
      %p69 = scmp.eq.s32.totalorder %s23, 0
      %p70 = por %p68, %p69
      %p71 = scmp.ne.s32.totalorder %s57, %s58
      %p72 = scmp.eq.s32.totalorder %s24, 1
      %p73 = por %p71, %p72
      %p75 = scmp.ne.s32.totalorder %s58, %s74
      %p76 = scmp.eq.s32.totalorder %s24, 0
      %p77 = por %p75, %p76
      %s79 = sadd.s32 %s78, 1
      %p82 = scmp.eq.s32.totalorder %s18, 1
      %p83 = scmp.ne.s32.totalorder %s78, %s80
      %p84 = scmp.eq.s32.totalorder %s18, 0
      %p85 = por %p83, %p84
      %p86 = scmp.ne.s32.totalorder %s78, %s80
      %p87 = scmp.eq.s32.totalorder %s23, 1
      %p88 = por %p86, %p87
      %p89 = scmp.ne.s32.totalorder %s80, %s81
      %p90 = scmp.eq.s32.totalorder %s23, 0
      %p91 = por %p89, %p90
      %p92 = scmp.ne.s32.totalorder %s80, %s81
      %p93 = scmp.eq.s32.totalorder %s24, 1
      %p94 = por %p92, %p93
      %p96 = scmp.ne.s32.totalorder %s81, %s95
      %p97 = scmp.eq.s32.totalorder %s24, 0
      %p98 = por %p96, %p97
      %s100 = sadd.s32 %s99, 1
      %p103 = scmp.eq.s32.totalorder %s18, 1
      %p104 = scmp.ne.s32.totalorder %s99, %s101
      %p105 = scmp.eq.s32.totalorder %s18, 0
      %p106 = por %p104, %p105
      %p107 = scmp.ne.s32.totalorder %s99, %s101
      %p108 = scmp.eq.s32.totalorder %s23, 1
      %p109 = por %p107, %p108
      %p110 = scmp.ne.s32.totalorder %s101, %s102
      %p111 = scmp.eq.s32.totalorder %s23, 0
      %p112 = por %p110, %p111
      %p113 = scmp.ne.s32.totalorder %s101, %s102
      %p114 = scmp.eq.s32.totalorder %s24, 1
      %p115 = por %p113, %p114
      %p117 = scmp.ne.s32.totalorder %s102, %s116
      %p118 = scmp.eq.s32.totalorder %s24, 0
      %p119 = por %p117, %p118
      %s121 = sadd.s32 %s120, 1
      %p124 = scmp.eq.s32.totalorder %s18, 1
      %p125 = scmp.ne.s32.totalorder %s120, %s122
      %p126 = scmp.eq.s32.totalorder %s18, 0
      %p127 = por %p125, %p126
      %p128 = scmp.ne.s32.totalorder %s120, %s122
      %p129 = scmp.eq.s32.totalorder %s23, 1
      %p130 = por %p128, %p129
      %p131 = scmp.ne.s32.totalorder %s122, %s123
      %p132 = scmp.eq.s32.totalorder %s23, 0
      %p133 = por %p131, %p132
      %p134 = scmp.ne.s32.totalorder %s122, %s123
      %p135 = scmp.eq.s32.totalorder %s24, 1
      %p136 = por %p134, %p135
      %p138 = scmp.ne.s32.totalorder %s123, %s137
      %p139 = scmp.eq.s32.totalorder %s24, 0
      %p140 = por %p138, %p139
      %s142 = sadd.s32 %s141, 1
      %p145 = scmp.eq.s32.totalorder %s18, 1
      %p146 = scmp.ne.s32.totalorder %s141, %s143
      %p147 = scmp.eq.s32.totalorder %s18, 0
      %p148 = por %p146, %p147
      %p149 = scmp.ne.s32.totalorder %s141, %s143
      %p150 = scmp.eq.s32.totalorder %s23, 1
      %p151 = por %p149, %p150
      %p152 = scmp.ne.s32.totalorder %s143, %s144
      %p153 = scmp.eq.s32.totalorder %s23, 0
      %p154 = por %p152, %p153
      %p155 = scmp.ne.s32.totalorder %s143, %s144
      %p156 = scmp.eq.s32.totalorder %s24, 1
      %p157 = por %p155, %p156
      %p159 = scmp.ne.s32.totalorder %s144, %s158
      %p160 = scmp.eq.s32.totalorder %s24, 0
      %p161 = por %p159, %p160
      %s163 = sadd.s32 %s162, 1
      %p166 = scmp.eq.s32.totalorder %s18, 1
      %p167 = scmp.ne.s32.totalorder %s162, %s164
      %p168 = scmp.eq.s32.totalorder %s18, 0
      %p169 = por %p167, %p168
      %p170 = scmp.ne.s32.totalorder %s162, %s164
      %p171 = scmp.eq.s32.totalorder %s23, 1
      %p172 = por %p170, %p171
      %p173 = scmp.ne.s32.totalorder %s164, %s165
      %p174 = scmp.eq.s32.totalorder %s23, 0
      %p175 = por %p173, %p174
      %p176 = scmp.ne.s32.totalorder %s164, %s165
      %p177 = scmp.eq.s32.totalorder %s24, 1
      %p178 = por %p176, %p177
      %p180 = scmp.ne.s32.totalorder %s165, %s179
      %p181 = scmp.eq.s32.totalorder %s24, 0
      %p182 = por %p180, %p181
      %s183 = ssub.s32 %s18, %s25
      %p184 = scmp.eq.s32.totalorder %s183, 0
      %s186 = sadd.s32 %s185, 1
      %s187 = scalar_select %p184, %s185, %s186
      %p190 = pneg %p184
      %p191 = scmp.eq.s32.totalorder %s18, 1
      %p192 = por %p190, %p191
      %p193 = scmp.ne.s32.totalorder %s185, %s188
      %p194 = scmp.eq.s32.totalorder %s18, 0
      %p195 = por %p193, %p194
      %p196 = scmp.ne.s32.totalorder %s185, %s188
      %p197 = scmp.eq.s32.totalorder %s23, 1
      %p198 = por %p196, %p197
      %p199 = scmp.ne.s32.totalorder %s188, %s189
      %p200 = scmp.eq.s32.totalorder %s23, 0
      %p201 = por %p199, %p200
      %p202 = scmp.ne.s32.totalorder %s188, %s189
      %p203 = scmp.eq.s32.totalorder %s24, 1
      %p204 = por %p202, %p203
      %p206 = scmp.ne.s32.totalorder %s189, %s205
      %p207 = scmp.eq.s32.totalorder %s24, 0
      %p208 = por %p206, %p207
      %p209 = scmp.le.s32.totalorder 1, %s18
      %p210 = scmp.lt.s32.totalorder %s18, 3
      %p211 = pnand %p209, %p210
      %p212 = pneg %p211
      // Predicated region
      $region9: #{tpu_custom_call.1} parent=5 // pred_check
        _
      $region10: #{tpu_custom_call.1} parent=5 // pred_check_branch
        %214 = sbr.rel (%p211) target = $region12
      $region11: #{tpu_custom_call.1} parent=5 // pred_region
        %s215 = ssub.s32 %s18, 1
        // Predicated region
        $region13: #{tpu_custom_call.1} parent=11 // pred_check
          %p216 = pneg %p91
        $region14: #{tpu_custom_call.1} parent=11 // pred_check_branch
          %218 = sbr.rel (%p216) target = $region16
        $region15: #{tpu_custom_call.1} parent=11 // pred_region
          _
        $region16: #{tpu_custom_call.1} parent=11 // pred_fallthru
          _
        // Predicated region
        $region17: #{tpu_custom_call.1} parent=11 // pred_check
          %p219 = pneg %p112
        $region18: #{tpu_custom_call.1} parent=11 // pred_check_branch
          %221 = sbr.rel (%p219) target = $region20
        $region19: #{tpu_custom_call.1} parent=11 // pred_region
          %s223 = ssub.s32 256, 256
          %224 = vsyncadd [#allocation3], %s223
          %s225 = sshll.u32 [#allocation2], 4
          %s226 = int_to_ptr.vmem [resolvable:$true] %s225
          %231 = dma.hbm_to_vmem [thread:$0]  %s3, 256, %s226, [#allocation3], 128, 128, 8
        $region20: #{tpu_custom_call.1} parent=11 // pred_fallthru
          _
        // Predicated region
        $region21: #{tpu_custom_call.1} parent=11 // pred_check
          %p232 = pneg %p133
        $region22: #{tpu_custom_call.1} parent=11 // pred_check_branch
          %234 = sbr.rel (%p232) target = $region24
        $region23: #{tpu_custom_call.1} parent=11 // pred_region
          _
        $region24: #{tpu_custom_call.1} parent=11 // pred_fallthru
          _
        // Predicated region
        $region25: #{tpu_custom_call.1} parent=11 // pred_check
          %p235 = pneg %p154
        $region26: #{tpu_custom_call.1} parent=11 // pred_check_branch
          %237 = sbr.rel (%p235) target = $region28
        $region27: #{tpu_custom_call.1} parent=11 // pred_region
          %s239 = ssub.s32 256, 256
          %240 = vsyncadd [#allocation6], %s239
          %s242 = sshll.u32 [#allocation5], 4
          %s243 = int_to_ptr.vmem [resolvable:$true] %s242
          %245 = dma.hbm_to_vmem [thread:$0]  %s5, 256, %s243, [#allocation6]
        $region28: #{tpu_custom_call.1} parent=11 // pred_fallthru
          _
        // Predicated region
        $region29: #{tpu_custom_call.1} parent=11 // pred_check
          %p246 = pneg %p175
        $region30: #{tpu_custom_call.1} parent=11 // pred_check_branch
          %248 = sbr.rel (%p246) target = $region32
        $region31: #{tpu_custom_call.1} parent=11 // pred_region
          _
        $region32: #{tpu_custom_call.1} parent=11 // pred_fallthru
          _
      $region12: #{tpu_custom_call.1} parent=5 // pred_fallthru
        _
      %p249 = scmp.lt.s32.totalorder %s18, 2
      // Predicated region
      $region33: #{tpu_custom_call.1} parent=5 // pred_check
        %p250 = pneg %p249
      $region34: #{tpu_custom_call.1} parent=5 // pred_check_branch
        %252 = sbr.rel (%p250) target = $region36
      $region35: #{tpu_custom_call.1} parent=5 // pred_region
        // Predicated region
        $region37: #{tpu_custom_call.1} parent=35 // pred_check
          %p253 = pneg %p38
        $region38: #{tpu_custom_call.1} parent=35 // pred_check_branch
          %255 = sbr.rel (%p253) target = $region40
        $region39: #{tpu_custom_call.1} parent=35 // pred_region
          %p256 = scmp.lt.s32.totalorder %s18, 1
          %s257 = scalar_select %p256, %s18, 1
          %s258 = smul.addr %s257, 2
          %s259 = smul.addr %s258, 8
          %s260 = scalar_lea.vmem %s0, %s259
        $region40: #{tpu_custom_call.1} parent=35 // pred_fallthru
          _
        // Predicated region
        $region41: #{tpu_custom_call.1} parent=35 // pred_check
          %p261 = pneg %p64
        $region42: #{tpu_custom_call.1} parent=35 // pred_check_branch
          %263 = sbr.rel (%p261) target = $region44
        $region43: #{tpu_custom_call.1} parent=35 // pred_region
          %p264 = scmp.lt.s32.totalorder %s18, 1
          %s265 = scalar_select %p264, %s18, 1
          %s266 = smul.addr %s265, 2
          %s267 = smul.addr %s266, 8
          %s268 = scalar_lea.vmem %s1, %s267
        $region44: #{tpu_custom_call.1} parent=35 // pred_fallthru
          _
      $region36: #{tpu_custom_call.1} parent=5 // pred_fallthru
        _
      %p269 = scmp.le.s32.totalorder 1, %s18
      %p270 = scmp.lt.s32.totalorder %s18, 3
      %p271 = pnand %p269, %p270
      %p272 = pneg %p271
      // Predicated region
      $region45: #{tpu_custom_call.1} parent=5 // pred_check
        _
      $region46: #{tpu_custom_call.1} parent=5 // pred_check_branch
        %274 = sbr.rel (%p271) target = $region48
      $region47: #{tpu_custom_call.1} parent=5 // pred_region
        %s275 = ssub.s32 %s18, 1
        // Predicated region
        $region49: #{tpu_custom_call.1} parent=47 // pred_check
          %p276 = pneg %p112
        $region50: #{tpu_custom_call.1} parent=47 // pred_check_branch
          %278 = sbr.rel (%p276) target = $region52
        $region51: #{tpu_custom_call.1} parent=47 // pred_region
          %279 = dma.done [#allocation3], 256
        $region52: #{tpu_custom_call.1} parent=47 // pred_fallthru
          _
        // Predicated region
        $region53: #{tpu_custom_call.1} parent=47 // pred_check
          %p280 = pneg %p154
        $region54: #{tpu_custom_call.1} parent=47 // pred_check_branch
          %282 = sbr.rel (%p280) target = $region56
        $region55: #{tpu_custom_call.1} parent=47 // pred_region
          %283 = dma.done [#allocation6], 256
        $region56: #{tpu_custom_call.1} parent=47 // pred_fallthru
          _
        %p284 = scmp.lt.s32.totalorder %s23, 1
        %s285 = scalar_select %p284, %s23, 1
        %s286 = smul.addr %s285, 2
        %s287 = smul.addr %s286, 8
        %s288 = scalar_lea.vmem %s0, %s287
        %p289 = pneg %p44
        %p290 = pneg %p41
        %p291 = scmp.lt.s32.totalorder %s23, 1
        %s292 = scalar_select %p291, %s23, 1
        %s293 = smul.addr %s292, 2
        %s294 = smul.addr %s293, 8
        %s295 = scalar_lea.vmem %s1, %s294
        %p296 = pneg %p70
        %p297 = pneg %p67
        %p298 = pneg %p91
        %p299 = pneg %p88
        %p300 = pneg %p112
        %p301 = pneg %p109
        %p302 = pneg %p133
        %p303 = pneg %p130
        %p304 = pneg %p154
        %p305 = pneg %p151
        %p306 = pneg %p175
        %p307 = pneg %p172
        %p308 = pneg %p201
        %p309 = pneg %p198
        %s310 = sand.u32 %s188, 1
        %s311 = scalar_lea.sflag [#allocation4], %s310
        %s312 = sand.u32 %s188, 1
        %s313 = smul.addr %s312, 16
        %s314 = scalar_lea.vmem [#allocation7], %s313
        %p315 = scmp.lt.s32.totalorder %s23, 1
        %s316 = scalar_select %p315, %s23, 1
        %s317 = smul.addr %s316, 2
        %s318 = smul.addr %s317, 8
        %s319 = scalar_lea.vmem %s0, %s318
        %p320 = scmp.lt.s32.totalorder %s23, 1
        %s321 = scalar_select %p320, %s23, 1
        %s322 = smul.addr %s321, 2
        %s323 = smul.addr %s322, 8
        %s324 = scalar_lea.vmem %s1, %s323
        %v325 = vld [vmem:[%s324] sm:$0xff]
        %v326 = vld [vmem:[%s324 + $0x8] sm:$0xff]
        %v327 = vld [vmem:[%s319] sm:$0xff]
        %v328 = vld [vmem:[%s319 + $0x8] sm:$0xff]
        %331 = vrot.lane.b32.xlu0 %v325, 17
        %v332 = vpop.permute.xlu0 %331
        %333 = vrot.lane.b32.xlu0 %v326, 17
        %v334 = vpop.permute.xlu0 %333
        %vm335 = vcmask 138240
        %v336 = vsel %vm335, %v332, %v334
        %v339 = vsel %vm335, 0.0, %v332
        %v340 = vld [vmem:[%s2] ss:$8 sm:$0x3]
        %v342 = vlaneseq
        %v343 = vshrl.u32 %v342, 7
        %v344 = vsub.s32 0, %v343
        %v345 = vrot.slane %v340, %v344
        %v346 = vlaneseq
        %v347 = vshrl.u32 %v346, 7
        %v348 = vsub.s32 1, %v347
        %v349 = vrot.slane %v340, %v348
        %v352 = vmul.f32 %v339, %v345
        %v353 = vmul.f32 %v336, %v349
        %354 = vrot.lane.b32.xlu0 %v325, 16
        %v355 = vpop.permute.xlu0 %354
        %356 = vrot.lane.b32.xlu0 %v326, 16
        %v357 = vpop.permute.xlu0 %356
        %vm358 = vcmask 130048
        %v359 = vsel %vm358, %v355, %v357
        %v362 = vsel %vm358, 0.0, %v355
        %s363 = scalar_lea.vmem %s2, 1
        %v364 = vld [vmem:[%s363] ss:$8 sm:$0x3]
        %v366 = vlaneseq
        %v367 = vshrl.u32 %v366, 7
        %v368 = vsub.s32 0, %v367
        %v369 = vrot.slane %v364, %v368
        %v370 = vlaneseq
        %v371 = vshrl.u32 %v370, 7
        %v372 = vsub.s32 1, %v371
        %v373 = vrot.slane %v364, %v372
        %v376 = vmul.f32 %v362, %v369
        %v377 = vmul.f32 %v359, %v373
        %378 = vrot.lane.b32.xlu0 %v325, 15
        %v379 = vpop.permute.xlu0 %378
        %380 = vrot.lane.b32.xlu0 %v326, 15
        %v381 = vpop.permute.xlu0 %380
        %vm382 = vcmask 121856
        %v383 = vsel %vm382, %v379, %v381
        %v386 = vsel %vm382, 0.0, %v379
        %s387 = scalar_lea.vmem %s2, 2
        %v388 = vld [vmem:[%s387] ss:$8 sm:$0x3]
        %v390 = vlaneseq
        %v391 = vshrl.u32 %v390, 7
        %v392 = vsub.s32 0, %v391
        %v393 = vrot.slane %v388, %v392
        %v394 = vlaneseq
        %v395 = vshrl.u32 %v394, 7
        %v396 = vsub.s32 1, %v395
        %v397 = vrot.slane %v388, %v396
        %v400 = vmul.f32 %v386, %v393
        %v401 = vmul.f32 %v383, %v397
        %402 = vrot.lane.b32.xlu0 %v325, 1
        %v403 = vpop.permute.xlu0 %402
        %404 = vrot.lane.b32.xlu0 %v326, 1
        %v405 = vpop.permute.xlu0 %404
        %vm406 = vcmask 7168
        %v407 = vsel %vm406, %v403, %v405
        %v410 = vsel %vm406, 0.0, %v403
        %s411 = scalar_lea.vmem %s2, 3
        %v412 = vld [vmem:[%s411] ss:$8 sm:$0x3]
        %v414 = vlaneseq
        %v415 = vshrl.u32 %v414, 7
        %v416 = vsub.s32 0, %v415
        %v417 = vrot.slane %v412, %v416
        %v418 = vlaneseq
        %v419 = vshrl.u32 %v418, 7
        %v420 = vsub.s32 1, %v419
        %v421 = vrot.slane %v412, %v420
        %v424 = vmul.f32 %v410, %v417
        %v425 = vmul.f32 %v407, %v421
        %s426 = scalar_lea.vmem %s2, 4
        %v427 = vld [vmem:[%s426] ss:$8 sm:$0x3]
        %v429 = vlaneseq
        %v430 = vshrl.u32 %v429, 7
        %v431 = vsub.s32 0, %v430
        %v432 = vrot.slane %v427, %v431
        %v433 = vlaneseq
        %v434 = vshrl.u32 %v433, 7
        %v435 = vsub.s32 1, %v434
        %v436 = vrot.slane %v427, %v435
        %v439 = vmul.f32 %v325, %v432
        %v440 = vmul.f32 %v326, %v436
        %441 = vrot.lane.b32.xlu0 %v325, 127
        %v442 = vpop.permute.xlu0 %441
        %443 = vrot.lane.b32.xlu0 %v326, 127
        %v444 = vpop.permute.xlu0 %443
        %vm445 = vcmask 1039360
        %v446 = vsel %vm445, %v442, %v444
        %v449 = vsel %vm445, %v444, 0.0
        %s450 = scalar_lea.vmem %s2, 5
        %v451 = vld [vmem:[%s450] ss:$8 sm:$0x3]
        %v453 = vlaneseq
        %v454 = vshrl.u32 %v453, 7
        %v455 = vsub.s32 0, %v454
        %v456 = vrot.slane %v451, %v455
        %v457 = vlaneseq
        %v458 = vshrl.u32 %v457, 7
        %v459 = vsub.s32 1, %v458
        %v460 = vrot.slane %v451, %v459
        %v463 = vmul.f32 %v446, %v456
        %v464 = vmul.f32 %v449, %v460
        %465 = vrot.lane.b32.xlu0 %v325, 113
        %v466 = vpop.permute.xlu0 %465
        %467 = vrot.lane.b32.xlu0 %v326, 113
        %v468 = vpop.permute.xlu0 %467
        %vm469 = vcmask 924672
        %v470 = vsel %vm469, %v466, %v468
        %v473 = vsel %vm469, %v468, 0.0
        %s474 = scalar_lea.vmem %s2, 6
        %v475 = vld [vmem:[%s474] ss:$8 sm:$0x3]
        %v477 = vlaneseq
        %v478 = vshrl.u32 %v477, 7
        %v479 = vsub.s32 0, %v478
        %v480 = vrot.slane %v475, %v479
        %v481 = vlaneseq
        %v482 = vshrl.u32 %v481, 7
        %v483 = vsub.s32 1, %v482
        %v484 = vrot.slane %v475, %v483
        %v487 = vmul.f32 %v470, %v480
        %v488 = vmul.f32 %v473, %v484
        %489 = vrot.lane.b32.xlu0 %v325, 112
        %v490 = vpop.permute.xlu0 %489
        %491 = vrot.lane.b32.xlu0 %v326, 112
        %v492 = vpop.permute.xlu0 %491
        %vm493 = vcmask 916480
        %v494 = vsel %vm493, %v490, %v492
        %v497 = vsel %vm493, %v492, 0.0
        %s498 = scalar_lea.vmem %s2, 7
        %v499 = vld [vmem:[%s498] ss:$8 sm:$0x3]
        %v501 = vlaneseq
        %v502 = vshrl.u32 %v501, 7
        %v503 = vsub.s32 0, %v502
        %v504 = vrot.slane %v499, %v503
        %v505 = vlaneseq
        %v506 = vshrl.u32 %v505, 7
        %v507 = vsub.s32 1, %v506
        %v508 = vrot.slane %v499, %v507
        %v511 = vmul.f32 %v494, %v504
        %v512 = vmul.f32 %v497, %v508
        %513 = vrot.lane.b32.xlu0 %v325, 111
        %v514 = vpop.permute.xlu0 %513
        %515 = vrot.lane.b32.xlu0 %v326, 111
        %v516 = vpop.permute.xlu0 %515
        %vm517 = vcmask 908288
        %v518 = vsel %vm517, %v514, %v516
        %v521 = vsel %vm517, %v516, 0.0
        %s522 = scalar_lea.vmem %s2, 16
        %v523 = vld [vmem:[%s522] ss:$8 sm:$0x3]
        %v525 = vlaneseq
        %v526 = vshrl.u32 %v525, 7
        %v527 = vsub.s32 0, %v526
        %v528 = vrot.slane %v523, %v527
        %v529 = vlaneseq
        %v530 = vshrl.u32 %v529, 7
        %v531 = vsub.s32 1, %v530
        %v532 = vrot.slane %v523, %v531
        %v535 = vmul.f32 %v518, %v528
        %v536 = vmul.f32 %v521, %v532
        %v537 = vld [vmem:[#allocation2] sm:$0xff]
        %v538 = vld [vmem:[#allocation2 + $0x8] sm:$0xff]
        %v539 = vld [vmem:[%s4] sm:$0xff]
        %v540 = vld [vmem:[%s4 + $0x8] sm:$0xff]
        %542 = vset.pattern.permute.xlu0 0
        %543 = vperm.xlu0 %542, %v539
        %v544 = vpop.permute.xlu0 %543
        %547 = vset.pattern.permute.xlu0 0
        %548 = vperm.xlu0 %547, %v540
        %v549 = vpop.permute.xlu0 %548
        %vm551 = vcmask 588800
        %v553 = vsel %vm551, %v537, 0
        %v556 = vsel %vm551, %v538, 0
        %558 = vmatprep.subr.mxu0 %v353
        %559 = vmatpush1.msra.mxu0 %v352
        %560 = vmatprep.subr.mxu0 %v377
        %561 = vmatpush1.msra.mxu0 %v376
        %562 = vmatprep.subr.mxu0 %v401
        %563 = vmatpush1.msra.mxu0 %v400
        %564 = vmatprep.subr.mxu0 %v425
        %565 = vmatpush1.msra.mxu0 %v424
        %566 = vmatprep.subr.mxu0 %v440
        %567 = vmatpush1.msra.mxu0 %v439
        %568 = vmatprep.subr.mxu0 %v464
        %569 = vmatpush1.msra.mxu0 %v463
        %570 = vmatprep.subr.mxu0 %v488
        %571 = vmatpush1.msra.mxu0 %v487
        %572 = vmatprep.subr.mxu0 %v512
        %573 = vmatpush1.msra.mxu0 %v511
        %574 = vmatprep.subr.mxu0 %v536
        %575 = vmatpush1.msra.mxu0 %v535
        %576 = vmatprep.subr.mxu0 0.0
        %577 = vmatpush1.msra.mxu0 0.0
        %578 = vmatprep.subr.mxu0 0.0
        %579 = vmatpush1.msra.mxu0 0.0
        %580 = vmatprep.subr.mxu0 0.0
        %581 = vmatpush1.msra.mxu0 0.0
        %582 = vmatprep.subr.mxu0 0.0
        %583 = vmatpush1.msra.mxu0 0.0
        %584 = vmatprep.subr.mxu0 0.0
        %585 = vmatpush1.msra.mxu0 0.0
        %586 = vmatprep.subr.mxu0 0.0
        %587 = vmatpush1.msra.mxu0 0.0
        %588 = vmatprep.subr.mxu0 0.0
        %589 = vmatpush1.msra.mxu0 0.0
        %590 = vmatprep.subr.mxu0 0.0
        %591 = vmatpush1.msra.mxu0 0.0
        %592 = vmatprep.subr.mxu0 0.0
        %593 = vmatpush1.msra.mxu0 0.0
        %594 = vmatprep.subr.mxu0 0.0
        %595 = vmatpush1.msra.mxu0 0.0
        %596 = vmatprep.subr.mxu0 0.0
        %597 = vmatpush1.msra.mxu0 0.0
        %598 = vmatprep.subr.mxu0 0.0
        %599 = vmatpush1.msra.mxu0 0.0
        %600 = vmatprep.subr.mxu0 0.0
        %601 = vmatpush1.msra.mxu0 0.0
        %602 = vmatprep.subr.mxu0 0.0
        %603 = vmatpush1.msra.mxu0 0.0
        %604 = vmatprep.subr.mxu0 0.0
        %605 = vmatpush1.msra.mxu0 0.0
        %606 = vmatprep.subr.mxu0 0.0
        %607 = vmatpush1.msra.mxu0 0.0
        %608 = vmatprep.subr.mxu0 0.0
        %609 = vmatpush1.msra.mxu0 0.0
        %610 = vmatprep.subr.mxu0 0.0
        %611 = vmatpush1.msra.mxu0 0.0
        %612 = vmatprep.subr.mxu0 0.0
        %613 = vmatpush1.msra.mxu0 0.0
        %614 = vmatprep.subr.mxu0 0.0
        %615 = vmatpush1.msra.mxu0 0.0
        %616 = vmatprep.subr.mxu0 0.0
        %617 = vmatpush1.msra.mxu0 0.0
        %618 = vmatprep.subr.mxu0 0.0
        %619 = vmatpush1.msra.mxu0 0.0
        %620 = vmatprep.subr.mxu0 0.0
        %621 = vmatpush1.msra.mxu0 0.0
        %622 = vmatprep.mubr.f32.mxu0 0.0
        %623 = vmatmul.mubr.f32.gmra.mrb[0].mxu0 %v553
        %v624 = vpop.f32.mrb[0].mxu0
        %v625 = vadd.f32 %v544, %v624
        %v626 = vpop.f32.mrb[0].mxu0
        %v627 = vadd.f32 %v544, %v626
        %628 = vmatprep.mubr.f32.mxu0 0.0
        %629 = vmatmul.mubr.f32.gmra.mrb[0].mxu0 %v556
        %v630 = vpop.f32.mrb[0].mxu0
        %v631 = vadd.f32 %v549, %v630
        %v632 = vpop.f32.mrb[0].mxu0
        %v633 = vadd.f32 %v549, %v632
        %634 = vdwg.mxu0
        %v635 = vxor.u32 %v625, 2147483648
        %v636 = vxor.u32 %v627, 2147483648
        %v637 = vxor.u32 %v631, 2147483648
        %v638 = vxor.u32 %v633, 2147483648
        %v639 = vmul.f32 %v635, 1.442695
        %v640 = vpow.pop %v639
        %v641 = vmul.f32 %v636, 1.442695
        %v642 = vpow.pop %v641
        %v643 = vmul.f32 %v637, 1.442695
        %v644 = vpow.pop %v643
        %v645 = vmul.f32 %v638, 1.442695
        %v646 = vpow.pop %v645
        %v647 = vadd.f32 %v640, 1.0
        %v648 = vadd.f32 %v642, 1.0
        %v649 = vadd.f32 %v644, 1.0
        %v650 = vadd.f32 %v646, 1.0
        %v651 = vrcp.pop %v647
        %v652 = vmul.f32 1.0, %v651
        %v653 = vrcp.pop %v648
        %v654 = vmul.f32 1.0, %v653
        %v655 = vrcp.pop %v649
        %v656 = vmul.f32 1.0, %v655
        %v657 = vrcp.pop %v650
        %v658 = vmul.f32 1.0, %v657
        %v659 = vmul.f32 %v625, %v652
        %v660 = vmul.f32 %v627, %v654
        %v661 = vmul.f32 %v631, %v656
        %v662 = vmul.f32 %v633, %v658
        %664 = vset.pattern.permute.xlu0 0
        %665 = vperm.xlu0 %664, %v327
        %v666 = vpop.permute.xlu0 %665
        %669 = vset.pattern.permute.xlu0 0
        %670 = vperm.xlu0 %669, %v328
        %v671 = vpop.permute.xlu0 %670
        %v673 = vadd.f32 %v659, %v666
        %v674 = vadd.f32 %v660, %v666
        %v675 = vadd.f32 %v661, %v671
        %v676 = vadd.f32 %v662, %v671
        %681 = vrot.lane.b32.xlu0 %v673, 17
        %v682 = vpop.permute.xlu0 %681
        %683 = vrot.lane.b32.xlu0 %v674, 17
        %v684 = vpop.permute.xlu0 %683
        %685 = vrot.lane.b32.xlu0 %v675, 17
        %v686 = vpop.permute.xlu0 %685
        %687 = vrot.lane.b32.xlu0 %v676, 17
        %v688 = vpop.permute.xlu0 %687
        %v689 = vsel %vm335, %v682, %v684
        %v690 = vsel %vm335, %v686, %v688
        %v695 = vsel %vm335, 0.0, %v682
        %v696 = vsel %vm335, 0.0, %v686
        %v697 = vmul.f32 %v695, %v345
        %v698 = vmul.f32 %v689, %v349
        %v699 = vmul.f32 %v696, %v345
        %v700 = vmul.f32 %v690, %v349
        %701 = vrot.lane.b32.xlu0 %v673, 16
        %v702 = vpop.permute.xlu0 %701
        %703 = vrot.lane.b32.xlu0 %v674, 16
        %v704 = vpop.permute.xlu0 %703
        %705 = vrot.lane.b32.xlu0 %v675, 16
        %v706 = vpop.permute.xlu0 %705
        %707 = vrot.lane.b32.xlu0 %v676, 16
        %v708 = vpop.permute.xlu0 %707
        %v709 = vsel %vm358, %v702, %v704
        %v710 = vsel %vm358, %v706, %v708
        %v715 = vsel %vm358, 0.0, %v702
        %v716 = vsel %vm358, 0.0, %v706
        %v717 = vmul.f32 %v715, %v369
        %v718 = vmul.f32 %v709, %v373
        %v719 = vmul.f32 %v716, %v369
        %v720 = vmul.f32 %v710, %v373
        %721 = vrot.lane.b32.xlu0 %v673, 15
        %v722 = vpop.permute.xlu0 %721
        %723 = vrot.lane.b32.xlu0 %v674, 15
        %v724 = vpop.permute.xlu0 %723
        %725 = vrot.lane.b32.xlu0 %v675, 15
        %v726 = vpop.permute.xlu0 %725
        %727 = vrot.lane.b32.xlu0 %v676, 15
        %v728 = vpop.permute.xlu0 %727
        %v729 = vsel %vm382, %v722, %v724
        %v730 = vsel %vm382, %v726, %v728
        %v735 = vsel %vm382, 0.0, %v722
        %v736 = vsel %vm382, 0.0, %v726
        %v737 = vmul.f32 %v735, %v393
        %v738 = vmul.f32 %v729, %v397
        %v739 = vmul.f32 %v736, %v393
        %v740 = vmul.f32 %v730, %v397
        %741 = vrot.lane.b32.xlu0 %v673, 1
        %v742 = vpop.permute.xlu0 %741
        %743 = vrot.lane.b32.xlu0 %v674, 1
        %v744 = vpop.permute.xlu0 %743
        %745 = vrot.lane.b32.xlu0 %v675, 1
        %v746 = vpop.permute.xlu0 %745
        %747 = vrot.lane.b32.xlu0 %v676, 1
        %v748 = vpop.permute.xlu0 %747
        %v749 = vsel %vm406, %v742, %v744
        %v750 = vsel %vm406, %v746, %v748
        %v755 = vsel %vm406, 0.0, %v742
        %v756 = vsel %vm406, 0.0, %v746
        %v757 = vmul.f32 %v755, %v417
        %v758 = vmul.f32 %v749, %v421
        %v759 = vmul.f32 %v756, %v417
        %v760 = vmul.f32 %v750, %v421
        %v761 = vmul.f32 %v673, %v432
        %v762 = vmul.f32 %v674, %v436
        %v763 = vmul.f32 %v675, %v432
        %v764 = vmul.f32 %v676, %v436
        %765 = vrot.lane.b32.xlu0 %v673, 127
        %v766 = vpop.permute.xlu0 %765
        %767 = vrot.lane.b32.xlu0 %v674, 127
        %v768 = vpop.permute.xlu0 %767
        %769 = vrot.lane.b32.xlu0 %v675, 127
        %v770 = vpop.permute.xlu0 %769
        %771 = vrot.lane.b32.xlu0 %v676, 127
        %v772 = vpop.permute.xlu0 %771
        %v773 = vsel %vm445, %v766, %v768
        %v774 = vsel %vm445, %v770, %v772
        %v779 = vsel %vm445, %v768, 0.0
        %v780 = vsel %vm445, %v772, 0.0
        %v781 = vmul.f32 %v773, %v456
        %v782 = vmul.f32 %v779, %v460
        %v783 = vmul.f32 %v774, %v456
        %v784 = vmul.f32 %v780, %v460
        %785 = vrot.lane.b32.xlu0 %v673, 113
        %v786 = vpop.permute.xlu0 %785
        %787 = vrot.lane.b32.xlu0 %v674, 113
        %v788 = vpop.permute.xlu0 %787
        %789 = vrot.lane.b32.xlu0 %v675, 113
        %v790 = vpop.permute.xlu0 %789
        %791 = vrot.lane.b32.xlu0 %v676, 113
        %v792 = vpop.permute.xlu0 %791
        %v793 = vsel %vm469, %v786, %v788
        %v794 = vsel %vm469, %v790, %v792
        %v799 = vsel %vm469, %v788, 0.0
        %v800 = vsel %vm469, %v792, 0.0
        %v801 = vmul.f32 %v793, %v480
        %v802 = vmul.f32 %v799, %v484
        %v803 = vmul.f32 %v794, %v480
        %v804 = vmul.f32 %v800, %v484
        %805 = vrot.lane.b32.xlu0 %v673, 112
        %v806 = vpop.permute.xlu0 %805
        %807 = vrot.lane.b32.xlu0 %v674, 112
        %v808 = vpop.permute.xlu0 %807
        %809 = vrot.lane.b32.xlu0 %v675, 112
        %v810 = vpop.permute.xlu0 %809
        %811 = vrot.lane.b32.xlu0 %v676, 112
        %v812 = vpop.permute.xlu0 %811
        %v813 = vsel %vm493, %v806, %v808
        %v814 = vsel %vm493, %v810, %v812
        %v819 = vsel %vm493, %v808, 0.0
        %v820 = vsel %vm493, %v812, 0.0
        %v821 = vmul.f32 %v813, %v504
        %v822 = vmul.f32 %v819, %v508
        %v823 = vmul.f32 %v814, %v504
        %v824 = vmul.f32 %v820, %v508
        %825 = vrot.lane.b32.xlu0 %v673, 111
        %v826 = vpop.permute.xlu0 %825
        %827 = vrot.lane.b32.xlu0 %v674, 111
        %v828 = vpop.permute.xlu0 %827
        %829 = vrot.lane.b32.xlu0 %v675, 111
        %v830 = vpop.permute.xlu0 %829
        %831 = vrot.lane.b32.xlu0 %v676, 111
        %v832 = vpop.permute.xlu0 %831
        %v833 = vsel %vm517, %v826, %v828
        %v834 = vsel %vm517, %v830, %v832
        %v839 = vsel %vm517, %v828, 0.0
        %v840 = vsel %vm517, %v832, 0.0
        %v841 = vmul.f32 %v833, %v528
        %v842 = vmul.f32 %v839, %v532
        %v843 = vmul.f32 %v834, %v528
        %v844 = vmul.f32 %v840, %v532
        %v845 = vld [vmem:[#allocation5] sm:$0xff]
        %v846 = vld [vmem:[#allocation5 + $0x8] sm:$0xff]
        %v847 = vld [vmem:[%s6] sm:$0xff]
        %849 = vset.pattern.permute.xlu0 0
        %850 = vperm.xlu0 %849, %v847
        %v851 = vpop.permute.xlu0 %850
        %v854 = vsel %vm358, %v846, 0
        %856 = vmatprep.subr.mxu0 %v698
        %857 = vmatpush1.msra.mxu0 %v697
        %858 = vmatprep.subr.mxu0 %v700
        %859 = vmatpush1.msra.mxu0 %v699
        %860 = vmatprep.subr.mxu0 %v718
        %861 = vmatpush1.msra.mxu0 %v717
        %862 = vmatprep.subr.mxu0 %v720
        %863 = vmatpush1.msra.mxu0 %v719
        %864 = vmatprep.subr.mxu0 %v738
        %865 = vmatpush1.msra.mxu0 %v737
        %866 = vmatprep.subr.mxu0 %v740
        %867 = vmatpush1.msra.mxu0 %v739
        %868 = vmatprep.subr.mxu0 %v758
        %869 = vmatpush1.msra.mxu0 %v757
        %870 = vmatprep.subr.mxu0 %v760
        %871 = vmatpush1.msra.mxu0 %v759
        %872 = vmatprep.subr.mxu0 %v762
        %873 = vmatpush1.msra.mxu0 %v761
        %874 = vmatprep.subr.mxu0 %v764
        %875 = vmatpush1.msra.mxu0 %v763
        %876 = vmatprep.subr.mxu0 %v782
        %877 = vmatpush1.msra.mxu0 %v781
        %878 = vmatprep.subr.mxu0 %v784
        %879 = vmatpush1.msra.mxu0 %v783
        %880 = vmatprep.subr.mxu0 %v802
        %881 = vmatpush1.msra.mxu0 %v801
        %882 = vmatprep.subr.mxu0 %v804
        %883 = vmatpush1.msra.mxu0 %v803
        %884 = vmatprep.subr.mxu0 %v822
        %885 = vmatpush1.msra.mxu0 %v821
        %886 = vmatprep.subr.mxu0 %v824
        %887 = vmatpush1.msra.mxu0 %v823
        %888 = vmatprep.subr.mxu0 %v842
        %889 = vmatpush1.msra.mxu0 %v841
        %890 = vmatprep.subr.mxu0 %v844
        %891 = vmatpush1.msra.mxu0 %v843
        %892 = vmatprep.subr.mxu0 0.0
        %893 = vmatpush1.msra.mxu0 0.0
        %894 = vmatprep.subr.mxu0 0.0
        %895 = vmatpush1.msra.mxu0 0.0
        %896 = vmatprep.subr.mxu0 0.0
        %897 = vmatpush1.msra.mxu0 0.0
        %898 = vmatprep.subr.mxu0 0.0
        %899 = vmatpush1.msra.mxu0 0.0
        %900 = vmatprep.subr.mxu0 0.0
        %901 = vmatpush1.msra.mxu0 0.0
        %902 = vmatprep.subr.mxu0 0.0
        %903 = vmatpush1.msra.mxu0 0.0
        %904 = vmatprep.subr.mxu0 0.0
        %905 = vmatpush1.msra.mxu0 0.0
        %906 = vmatprep.subr.mxu0 0.0
        %907 = vmatpush1.msra.mxu0 0.0
        %908 = vmatprep.subr.mxu0 0.0
        %909 = vmatpush1.msra.mxu0 0.0
        %910 = vmatprep.subr.mxu0 0.0
        %911 = vmatpush1.msra.mxu0 0.0
        %912 = vmatprep.subr.mxu0 0.0
        %913 = vmatpush1.msra.mxu0 0.0
        %914 = vmatprep.subr.mxu0 0.0
        %915 = vmatpush1.msra.mxu0 0.0
        %916 = vmatprep.subr.mxu0 0.0
        %917 = vmatpush1.msra.mxu0 0.0
        %918 = vmatprep.subr.mxu0 0.0
        %919 = vmatpush1.msra.mxu0 0.0
        %920 = vmatprep.mubr.f32.mxu0 %v854
        %921 = vmatmul.mubr.f32.gmra.mrb[0].mxu0 %v845
        %v922 = vpop.f32.mrb[0].mxu0
        %v923 = vadd.f32 %v851, %v922
        %v924 = vpop.f32.mrb[0].mxu0
        %v925 = vadd.f32 %v851, %v924
        %926 = vdwg.mxu0
        %v927 = vadd.f32 %v923, %v325
        %v928 = vadd.f32 %v925, %v326
        %v929 = vxor.u32 %v927, 2147483648
        %v930 = vxor.u32 %v928, 2147483648
        %v931 = vmul.f32 %v929, 1.442695
        %v932 = vpow.pop %v931
        %v933 = vmul.f32 %v930, 1.442695
        %v934 = vpow.pop %v933
        %v935 = vadd.f32 %v932, 1.0
        %v936 = vadd.f32 %v934, 1.0
        %v937 = vrcp.pop %v935
        %v938 = vmul.f32 1.0, %v937
        %v939 = vrcp.pop %v936
        %v940 = vmul.f32 1.0, %v939
        %v941 = vmul.f32 %v927, %v938
        %v942 = vmul.f32 %v928, %v940
        %943 = vst [vmem:[%s314] sm:$0xff] %v941
        %944 = vst [vmem:[%s314 + $0x8] sm:$0xff] %v942
        %s945 = sand.u32 %s188, 1
        %s946 = scalar_lea.sflag [#allocation4], %s945
        %s947 = sand.u32 %s188, 1
        %s948 = smul.addr %s947, 16
        %s949 = scalar_lea.vmem [#allocation7], %s948
        // Predicated region
        $region57: #{tpu_custom_call.1} parent=47 // pred_check
          %p950 = pneg %p198
        $region58: #{tpu_custom_call.1} parent=47 // pred_check_branch
          %952 = sbr.rel (%p950) target = $region60
        $region59: #{tpu_custom_call.1} parent=47 // pred_region
          %s954 = ssub.s32 256, 256
          %955 = vsyncadd %s946, %s954
          %s956 = smul.addr %s23, 2
          %s957 = smul.addr %s956, 128
          %s958 = scalar_lea.hbm %s7, %s957
          %s960 = sshll.u32 %s949, 4
          %s961 = int_to_ptr.vmem [resolvable:$true] %s960
          %963 = dma.vmem_to_hbm [thread:$0]  %s961, 256, %s958, %s946
        $region60: #{tpu_custom_call.1} parent=47 // pred_fallthru
          _
      $region48: #{tpu_custom_call.1} parent=5 // pred_fallthru
        _
      %p964 = scmp.le.s32.totalorder 2, %s18
      // Predicated region
      $region61: #{tpu_custom_call.1} parent=5 // pred_check
        %p965 = pneg %p964
      $region62: #{tpu_custom_call.1} parent=5 // pred_check_branch
        %967 = sbr.rel (%p965) target = $region64
      $region63: #{tpu_custom_call.1} parent=5 // pred_region
        %s968 = ssub.s32 %s18, 2
        // Predicated region
        $region65: #{tpu_custom_call.1} parent=63 // pred_check
          %p969 = pneg %p204
        $region66: #{tpu_custom_call.1} parent=63 // pred_check_branch
          %971 = sbr.rel (%p969) target = $region68
        $region67: #{tpu_custom_call.1} parent=63 // pred_region
          %s972 = sand.u32 %s189, 1
          %s973 = scalar_lea.sflag [#allocation4], %s972
          %s974 = sand.u32 %s189, 1
          %s975 = smul.addr %s974, 16
          %s976 = scalar_lea.vmem [#allocation7], %s975
          %977 = dma.done %s973, 256
        $region68: #{tpu_custom_call.1} parent=63 // pred_fallthru
          _
      $region64: #{tpu_custom_call.1} parent=5 // pred_fallthru
        _
    $region6: #{tpu_custom_call.1} parent=1 // loop_footer
      %s22 = sadd.s32 1, %s18
    $region7: #{tpu_custom_call.1} parent=1 // loop_footer_branch
      %17 = sbr.rel target = $region3
    $region8: #{tpu_custom_call.1} parent=1 // loop_exit
      _
    %978 = vsyncpa [#allocation3], 1
    %s979 = scalar_lea.sflag [#allocation3], 1
    %980 = vsyncpa %s979, 1
    %981 = vsyncpa [#allocation6], 1
    %982 = vsyncpa [#allocation4], 1
    %s983 = scalar_lea.sflag [#allocation4], 1
    %984 = vsyncpa %s983, 1

</llo_original>
